<compile_context>
chip_gen: v5e
topology: v5e:2x2
jax: 0.10.0
libtpu: 0.0.40
codegen_flags: <defaults>
</compile_context>

<pallas_src>
import jax
import jax.numpy as jnp
from jax.experimental import pallas as pl
from jax.experimental.pallas import tpu as pltpu

_LANE = 128


def _round_up(a, b):
    return (a + b - 1) // b * b


def prompt_add_kernel(x_ref, p_ref, o_ref):
    # x_ref: (tile_n, tile_m); p_ref: (1, tile_m) -> sublane-broadcast add on the VPU.
    o_ref[...] = x_ref[...] + p_ref[...]


def _vmem_capacity_bytes():
    try:
        return int(pltpu.get_tpu_info().vmem_capacity_bytes)
    except Exception:
        return 64 << 20  # conservative fallback (v7x per-TensorCore VMEM)


def _choose_tiles(N, M, itemsize):
    """Pick (tile_n, tile_m, vmem_limit_bytes) for a memory-bound broadcast-add."""
    phys = _vmem_capacity_bytes()
    # Double-buffered working-set budget: ~24 MiB on v7x, ~48 MiB on v5e/v6e.
    budget = phys * 3 // 8
    # Sublane packing quantum: 8 rows for f32, 16 for bf16, 32 for int8/fp8.
    quantum = max(8, 32 // max(1, itemsize))

    # Batch tile: big rows cut per-grid-step overhead; quantum-aligned when sub-tiling N.
    tile_n_cap = 128 if phys >= (128 << 20) else 64
    if N <= tile_n_cap:
        tile_n = N                                   # full dim -> always a legal block
    else:
        tile_n = (tile_n_cap // quantum) * quantum

    # M tile: as large as the VMEM budget allows (lane-dense, 128-aligned).
    # Working set ~= 2 buffers x (x block + out block + prompt row).
    per_m_bytes = 2 * (2 * tile_n + 1) * itemsize
    tile_m_cap = max(_LANE, (budget // per_m_bytes) // _LANE * _LANE)
    if M <= _LANE or M <= tile_m_cap:
        tile_m = M                                   # single M tile: prompt DMA'd exactly once
    else:
        n_m = pl.cdiv(M, tile_m_cap)
        tile_m = _round_up(pl.cdiv(M, n_m), _LANE)   # near-even, unmasked 128-multiple tiles

    # Only force a megacore split when everything fits in a single grid step but
    # the array is big enough that a second TensorCore actually helps; the one
    # extra ~0.35 us step is noise on 1-TC chips at this size.
    total_bytes = N * M * itemsize
    if (pl.cdiv(N, tile_n) == 1 and pl.cdiv(M, tile_m) == 1
            and total_bytes > (2 << 20)):
        if N >= 2 * quantum:
            tile_n = _round_up(pl.cdiv(N, 2), quantum)
        elif M > _LANE:
            tile_m = _round_up(pl.cdiv(M, 2), _LANE)

    vmem_limit = min(64 << 20, phys * 3 // 4)        # headroom above the working set
    return tile_n, tile_m, vmem_limit


def prompt_arbiter_forward(x_nchw, prompt_chw):
    """out[n] = x[n] + prompt  (exactly PromptArbiter.forward)."""
    N, C, H, W = x_nchw.shape
    assert prompt_chw.shape == (C, H, W)
    M = C * H * W

    # Match PyTorch type promotion (e.g. bf16 x + f32 prompt -> f32 result).
    out_dtype = jnp.result_type(x_nchw.dtype, prompt_chw.dtype)

    # Lane-dense flattening of contiguous NCHW -> (N, M): no transpose, no pad.
    x2 = x_nchw.reshape(N, M).astype(out_dtype)
    p2 = prompt_chw.reshape(1, M).astype(out_dtype)

    itemsize = jnp.dtype(out_dtype).itemsize
    tile_n, tile_m, vmem_limit = _choose_tiles(N, M, itemsize)

    grid_m = pl.cdiv(M, tile_m)
    grid_n = pl.cdiv(N, tile_n)

    # Batch tiles innermost: the prompt block index depends only on the M tile,
    # so it stays resident across all batch tiles (no redundant prompt re-DMA).
    out2 = pl.pallas_call(
        prompt_add_kernel,
        out_shape=jax.ShapeDtypeStruct((N, M), out_dtype),
        grid=(grid_m, grid_n),
        in_specs=[
            pl.BlockSpec((tile_n, tile_m), lambda j, i: (i, j)),
            pl.BlockSpec((1, tile_m), lambda j, i: (0, j)),   # prompt shared by all batch tiles
        ],
        out_specs=pl.BlockSpec((tile_n, tile_m), lambda j, i: (i, j)),
        compiler_params=pltpu.CompilerParams(
            dimension_semantics=("parallel", "parallel"),
            vmem_limit_bytes=vmem_limit),
    )(x2, p2)

    return out2.reshape(N, C, H, W)


if __name__ == "__main__":
    # PromptArbiter(args.image_size = 16); batch of 2 RGB images.
    isize = 16
    N, C = 2, 3

    key = jax.random.PRNGKey(0)
    kx, kp = jax.random.split(key)
    x = jax.random.normal(kx, (N, C, isize, isize), dtype=jnp.float32)
    # build_prompt(): arbiter = torch.randn([3, isize, isize])
    prompt = jax.random.normal(kp, (C, isize, isize), dtype=jnp.float32)

    out = prompt_arbiter_forward(x, prompt)
    out = jax.block_until_ready(out)

    # Reference: the prompt buffer is fully overwritten by the patch, so forward == x + prompt.
    ref = x + prompt[None]
    assert out.shape == (N, C, isize, isize)
    assert jnp.allclose(out, ref, atol=1e-6, rtol=1e-6)
    print("KERNEL_OK")
</pallas_src>

<mosaic_0001>
module attributes {stable_mosaic.version = 11 : i64} {
  func.func @prompt_add_kernel(%arg0: i32, %arg1: i32, %arg2: memref<2x768xf32, #tpu.memory_space<vmem>>, %arg3: memref<1x768xf32, #tpu.memory_space<vmem>>, %arg4: memref<2x768xf32, #tpu.memory_space<vmem>>) attributes {dimension_semantics = [#tpu.dimension_semantics<parallel>, #tpu.dimension_semantics<parallel>], iteration_bounds = array<i64: 1, 1>, scalar_prefetch = 0 : i64, scratch_operands = 0 : i64, tpu.core_type = #tpu.core_type<tc>, window_params = [{transform_indices = @transform_0, window_bounds = array<i64: 2, 768>}, {transform_indices = @transform_1, window_bounds = array<i64: 1, 768>}, {transform_indices = @transform_2, window_bounds = array<i64: 2, 768>}]} {
    %c0 = arith.constant 0 : index
    %c0_0 = arith.constant 0 : index
    %0 = vector.load %arg2[%c0, %c0_0] : memref<2x768xf32, #tpu.memory_space<vmem>>, vector<2x768xf32>
    %c0_1 = arith.constant 0 : index
    %c0_2 = arith.constant 0 : index
    %1 = vector.load %arg3[%c0_1, %c0_2] : memref<1x768xf32, #tpu.memory_space<vmem>>, vector<1x768xf32>
    %2 = vector.broadcast %1 : vector<1x768xf32> to vector<2x768xf32>
    %3 = arith.addf %0, %2 : vector<2x768xf32>
    %c0_3 = arith.constant 0 : index
    %c0_4 = arith.constant 0 : index
    %4 = vector.load %arg4[%c0_3, %c0_4] : memref<2x768xf32, #tpu.memory_space<vmem>>, vector<2x768xf32>
    tpu.vector_store %arg4[%c0_3, %c0_4], %3 {strides = array<i32>} : memref<2x768xf32, #tpu.memory_space<vmem>>, vector<2x768xf32>,
    return
  }
  func.func @transform_0(%arg0: i32, %arg1: i32) -> (i32, i32) {
    %c0_i32 = arith.constant 0 : i32
    return %arg1, %arg0 : i32, i32
  }
  func.func @transform_1(%arg0: i32, %arg1: i32) -> (i32, i32) {
    %c0_i32 = arith.constant 0 : i32
    %c0_i32_0 = arith.constant 0 : i32
    return %c0_i32, %arg0 : i32, i32
  }
  func.func @transform_2(%arg0: i32, %arg1: i32) -> (i32, i32) {
    %c0_i32 = arith.constant 0 : i32
    return %arg1, %arg0 : i32, i32
  }
}

</mosaic_0001>

<llo_original>
// kernel: tpu_custom_call.1
$region0: #{tpu_custom_call.1}
  #allocation0 [shape = 'u32[]', space=smem, size = 0x4, offset = 0x4, fixed_abs, tag = 'smem constant byte address 0x4 - core index']
  #allocation1 [shape = 'u32[72,128]{1,0:T(1,128)}', space=vmem, size = 0x9000, scoped, tag = 'internal scratch']
  %s0 = inlined_call_operand.hbm [shape: f32[2,768], index: 0, kind: input, shape index: {}]
  %s1 = inlined_call_operand.hbm [shape: f32[1,768], index: 1, kind: input, shape index: {}]
  %s2 = inlined_call_operand.hbm [shape: f32[2,768], index: 2, kind: output, shape index: {}]
  %s3 = sld [smem:[#allocation0]]
  $region26: #{tpu_custom_call.1} parent=0
    _
  %s5 = ssub.s32 1, %s3
  %s6 = scalar_select 0, %s5, %s3
  $region1: #{tpu_custom_call.1} parent=0
    #allocation2 [shape = 'u8[6144]{0}', space=vmem, size = 0x1800, scoped, tag = 'input window, operand 0, single buffered']
    #allocation3 [shape = 's32[1]{0}', space=sflag, size = 0x4, scoped, tag = 'scoped memory for tpu_custom_call.1']
    #allocation4 [shape = 's32[1]{0}', space=sflag, size = 0x4, scoped, tag = 'scoped memory for tpu_custom_call.1']
    #allocation5 [shape = 'u8[3072]{0}', space=vmem, size = 0xc00, scoped, tag = 'input window, operand 1, single buffered']
    #allocation6 [shape = 's32[1]{0}', space=sflag, size = 0x4, scoped, tag = 'scoped memory for tpu_custom_call.1']
    #allocation7 [shape = 'u8[6144]{0}', space=vmem, size = 0x1800, scoped, tag = 'output window, operand 0, single buffered']
    %7 = vsyncpa [#allocation3], 0
    %8 = vsyncpa [#allocation6], 0
    %9 = vsyncpa [#allocation4], 0
    // Predicated region
    $region2: #{tpu_custom_call.1} parent=1 // pred_check
      _
    $region3: #{tpu_custom_call.1} parent=1 // pred_check_branch
      %11 = sbr.rel (0) target = $region5
    $region4: #{tpu_custom_call.1} parent=1 // pred_region
      %13 = vsyncadd [#allocation3], 0
      %s15 = sshll.u32 %s0, 4
      %s16 = int_to_ptr.hbm [resolvable:$true] %s15
      %s17 = sshll.u32 [#allocation2], 4
      %s18 = int_to_ptr.vmem [resolvable:$true] %s17
      %20 = dma.hbm_to_vmem [thread:$0]  %s16, 192, %s18, [#allocation3]
    $region5: #{tpu_custom_call.1} parent=1 // pred_fallthru
      _
    // Predicated region
    $region6: #{tpu_custom_call.1} parent=1 // pred_check
      _
    $region7: #{tpu_custom_call.1} parent=1 // pred_check_branch
      %22 = sbr.rel (0) target = $region9
    $region8: #{tpu_custom_call.1} parent=1 // pred_region
      %24 = vsyncadd [#allocation6], 0
      %s26 = sshll.u32 %s1, 4
      %s27 = int_to_ptr.hbm [resolvable:$true] %s26
      %s28 = sshll.u32 [#allocation5], 4
      %s29 = int_to_ptr.vmem [resolvable:$true] %s28
      %31 = dma.hbm_to_vmem [thread:$0]  %s27, 96, %s29, [#allocation6]
    $region9: #{tpu_custom_call.1} parent=1 // pred_fallthru
      _
    // Predicated region
    $region10: #{tpu_custom_call.1} parent=1 // pred_check
      _
    $region11: #{tpu_custom_call.1} parent=1 // pred_check_branch
      %33 = sbr.rel (0) target = $region13
    $region12: #{tpu_custom_call.1} parent=1 // pred_region
      %35 = dma.done [#allocation3], 192
    $region13: #{tpu_custom_call.1} parent=1 // pred_fallthru
      _
    // Predicated region
    $region14: #{tpu_custom_call.1} parent=1 // pred_check
      _
    $region15: #{tpu_custom_call.1} parent=1 // pred_check_branch
      %37 = sbr.rel (0) target = $region17
    $region16: #{tpu_custom_call.1} parent=1 // pred_region
      %39 = dma.done [#allocation6], 96
    $region17: #{tpu_custom_call.1} parent=1 // pred_fallthru
      _
    %v40 = vld [vmem:[#allocation2] sm:$0xff]
    %v41 = vld [vmem:[#allocation2 + $0x8] sm:$0xf]
    %v42 = vld [vmem:[#allocation5] sm:$0x3f]
    %v44 = vperm.slane %v42, 0
    %v45 = vperm.slane %v42, 1
    %v46 = vperm.slane %v42, 2
    %v47 = vperm.slane %v42, 3
    %v48 = vperm.slane %v42, 4
    %v49 = vperm.slane %v42, 5
    %v50 = vrot.slane %v45, 6
    %v51 = vrot.slane %v46, 4
    %v52 = vrot.slane %v47, 2
    %v53 = vrot.slane %v49, 6
    %vm54 = vcmask 1041408
    %v55 = vsel %vm54, %v44, %v50
    %vm56 = vcmask 1045508
    %v57 = vsel %vm56, %v51, %v52
    %vm58 = vcmask 1043456
    %v59 = vsel %vm58, %v55, %v57
    %v60 = vsel %vm54, %v48, %v53
    %v63 = vadd.f32 %v40, %v59
    %v64 = vadd.f32 %v41, %v60
    %65 = vst [vmem:[#allocation7] sm:$0xff] %v63
    %66 = vst [vmem:[#allocation7 + $0x8] sm:$0xf] %v64
    // Predicated region
    $region18: #{tpu_custom_call.1} parent=1 // pred_check
      _
    $region19: #{tpu_custom_call.1} parent=1 // pred_check_branch
      %68 = sbr.rel (0) target = $region21
    $region20: #{tpu_custom_call.1} parent=1 // pred_region
      %70 = vsyncadd [#allocation4], 0
      %s72 = sshll.u32 [#allocation7], 4
      %s73 = int_to_ptr.vmem [resolvable:$true] %s72
      %s74 = sshll.u32 %s2, 4
      %s75 = int_to_ptr.hbm [resolvable:$true] %s74
      %77 = dma.vmem_to_hbm [thread:$0]  %s73, 192, %s75, [#allocation4]
    $region21: #{tpu_custom_call.1} parent=1 // pred_fallthru
      _
    // Predicated region
    $region22: #{tpu_custom_call.1} parent=1 // pred_check
      _
    $region23: #{tpu_custom_call.1} parent=1 // pred_check_branch
      %79 = sbr.rel (0) target = $region25
    $region24: #{tpu_custom_call.1} parent=1 // pred_region
      %81 = dma.done [#allocation4], 192
    $region25: #{tpu_custom_call.1} parent=1 // pred_fallthru
      _
    %82 = vsyncpa [#allocation3], 1
    %83 = vsyncpa [#allocation6], 1
    %84 = vsyncpa [#allocation4], 1

</llo_original>
